<compile_context>
chip_gen: v5e
topology: v5e:2x2
jax: 0.10.0
libtpu: 0.0.40
codegen_flags: <defaults>
</compile_context>

<pallas_src>
import math

import numpy as np
import jax
import jax.numpy as jnp
from jax.experimental import pallas as pl
from jax.experimental.pallas import tpu as pltpu

# Module "parameters" (deterministic, from __init__): no learned weights.
EMBEDDING_DIM = 32
PADDING_IDX = 1
LEFT_PAD = False      # unused in forward
QUANT_N = 1           # only used for sinpostype == 'relative'
INIT_SIZE = 1024      # table is rebuilt/extended as needed; irrelevant here

# TODO(synk): incremental_state decode path and sinpostype in
# {'relative','duration','absolute','ratio'} are data-dependent gather branches not
# exercised by the default forward; only the default path is implemented here.

TARGET_LANES = 512    # packed output row width (multiple of 128 -> unmasked vst)


def _round_up(x, m):
    return ((x + m - 1) // m) * m


def _sinpos_kernel(posb_ref, freq_ref, out_ref):
    """One lane-dense (TILE_R, LANES) block of positional embeddings.

    posb_ref : (TILE_R, KP)  f32  columns 0..G-1: masked positions (0 at padding)
                                  columns G..2G-1: non-padding mask per slot
                                  zero-padded to KP.
    freq_ref : (KP, LANES)   f32  block-diagonal constant: rows 0..G-1 carry the
                                  inv-freq per slot (sin+cos lanes), rows G..2G-1
                                  carry +pi/2 on that slot's cos lanes.
    out_ref  : (TILE_R, LANES) f32
    """
    # angle[r, g*E + j] = pos[r, g] * inv_freq[j % half]  (+ mask[r, g] * pi/2 on
    # cos lanes).  Padding slots -> angle == 0 -> sin == 0 (matches the zeroed
    # padding_idx row of the reference table).  cos(x) = sin(x + pi/2).
    angle = jnp.dot(posb_ref[...], freq_ref[...],
                    preferred_element_type=jnp.float32,
                    precision=jax.lax.Precision.HIGHEST)
    out_ref[...] = jnp.sin(angle)


def _make_freq(embedding_dim, group, lanes, kp):
    """Host-built (hoisted) block-diagonal constant for the broadcast matmul."""
    half = embedding_dim // 2
    # Guard half == 1 (embedding_dim == 2): the PyTorch original divides by zero.
    scale = math.log(10000.0) / max(half - 1, 1)
    inv_freq = np.exp(np.arange(half, dtype=np.float32) * np.float32(-scale))

    freq = np.zeros((kp, lanes), np.float32)
    for g in range(group):
        lo = g * embedding_dim
        freq[g, lo:lo + half] = inv_freq                     # sin lanes
        freq[g, lo + half:lo + 2 * half] = inv_freq          # cos lanes
        freq[group + g, lo + half:lo + 2 * half] = np.pi / 2.0   # cos offset, mask-gated
        # odd embedding_dim: last lane of the block stays all-zero -> sin(0) = 0
    return jnp.asarray(freq)


def sinusoidal_length_control_pos_emb(tokens, *, padding_idx=PADDING_IDX,
                                      embedding_dim=EMBEDDING_DIM,
                                      max_tile_rows=1024):
    """tokens: [bsz, seq_len] integer ids -> [bsz, seq_len, embedding_dim] float32."""
    bsz, seq_len = tokens.shape

    # Lane-dense packing: GROUP consecutive positions share one LANES-wide row.
    if embedding_dim <= 128 and 128 % embedding_dim == 0:
        group = TARGET_LANES // embedding_dim
    else:
        group = 1
    lanes = group * embedding_dim
    kp = _round_up(2 * group, 8)          # matmul contraction dim, 8-aligned

    # fairseq utils.make_positions, computed in the wrapper (cheap O(bsz*S)).
    # We ship masked positions (0 at padding) since the padding row of the
    # reference table is zeroed anyway.  f32 cumsum is exact for S < 2**24.
    maskf = (tokens != padding_idx).astype(jnp.float32)
    positions = (jnp.cumsum(maskf, axis=1) + float(padding_idx)) * maskf

    rows = -(-seq_len // group)           # packed rows per batch
    seq_pad = rows * group
    if seq_pad != seq_len:
        pad = seq_pad - seq_len
        positions = jnp.pad(positions, ((0, 0), (0, pad)))
        maskf = jnp.pad(maskf, ((0, 0), (0, pad)))

    # Flatten batch*rows into one grid axis so tiles stay full for small bsz/seq.
    total = bsz * rows
    tile_r = min(max_tile_rows, _round_up(total, 8))   # multiple of 8 sublanes
    total_pad = _round_up(total, tile_r)

    pos_g = positions.reshape(total, group)
    msk_g = maskf.reshape(total, group)
    posb = jnp.concatenate([pos_g, msk_g], axis=-1)     # (total, 2*group)
    if kp != 2 * group:
        posb = jnp.pad(posb, ((0, 0), (0, kp - 2 * group)))
    if total_pad != total:
        posb = jnp.pad(posb, ((0, total_pad - total), (0, 0)))

    freq = _make_freq(embedding_dim, group, lanes, kp)

    out_packed = pl.pallas_call(
        _sinpos_kernel,
        out_shape=jax.ShapeDtypeStruct((total_pad, lanes), jnp.float32),
        grid=(total_pad // tile_r,),
        in_specs=[
            pl.BlockSpec((tile_r, kp), lambda r: (r, 0)),
            pl.BlockSpec((kp, lanes), lambda r: (0, 0)),   # constant, stays resident
        ],
        out_specs=pl.BlockSpec((tile_r, lanes), lambda r: (r, 0)),
        compiler_params=pltpu.CompilerParams(
            dimension_semantics=("parallel",)),
    )(posb, freq)

    # Free contiguous un-packing: (total, GROUP*E) -> (bsz, seq_pad, E).
    out = out_packed[:total].reshape(bsz, seq_pad, embedding_dim)
    return out[:, :seq_len, :]


def _reference_forward(tokens, padding_idx, embedding_dim):
    """Pure-JAX port of the PyTorch forward (sinpostype=None path)."""
    bsz, seq_len = tokens.shape
    half_dim = embedding_dim // 2
    mask = (tokens != padding_idx).astype(jnp.int32)
    positions = jnp.cumsum(mask, axis=1) * mask + padding_idx          # make_positions

    max_pos = padding_idx + 1 + seq_len
    scale = math.log(10000.0) / (half_dim - 1)
    inv_freq = jnp.exp(jnp.arange(half_dim, dtype=jnp.float32) * (-scale))
    ang = jnp.arange(max_pos, dtype=jnp.float32)[:, None] * inv_freq[None, :]
    table = jnp.concatenate([jnp.sin(ang), jnp.cos(ang)], axis=1)
    if embedding_dim % 2 == 1:
        table = jnp.concatenate([table, jnp.zeros((max_pos, 1), jnp.float32)], axis=1)
    table = table.at[padding_idx, :].set(0.0)
    return table[positions]                                            # index_select + view


if __name__ == "__main__":
    key = jax.random.PRNGKey(0)
    bsz, seq_len = 2, 8

    tokens = jax.random.randint(key, (bsz, seq_len), minval=2, maxval=50, dtype=jnp.int32)
    # right-side padding (left_pad=False)
    tokens = tokens.at[0, 6:].set(PADDING_IDX)
    tokens = tokens.at[1, 5:].set(PADDING_IDX)

    out = jax.block_until_ready(sinusoidal_length_control_pos_emb(tokens))
    ref = jax.block_until_ready(_reference_forward(tokens, PADDING_IDX, EMBEDDING_DIM))

    assert out.shape == (bsz, seq_len, EMBEDDING_DIM)
    assert out.dtype == jnp.float32
    assert jnp.allclose(out, ref, rtol=1e-4, atol=1e-4), "mismatch vs reference"

    # Secondary check: seq_len not a multiple of the packing group (pad path).
    tokens2 = jax.random.randint(jax.random.PRNGKey(1), (3, 13),
                                 minval=2, maxval=50, dtype=jnp.int32)
    tokens2 = tokens2.at[0, 10:].set(PADDING_IDX)
    tokens2 = tokens2.at[2, 7:].set(PADDING_IDX)
    out2 = jax.block_until_ready(sinusoidal_length_control_pos_emb(tokens2))
    ref2 = _reference_forward(tokens2, PADDING_IDX, EMBEDDING_DIM)
    assert jnp.allclose(out2, ref2, rtol=1e-4, atol=1e-4), "mismatch vs reference (pad path)"

    print("KERNEL_OK")
</pallas_src>

<mosaic_0001>
module attributes {stable_mosaic.version = 11 : i64} {
  func.func @_sinpos_kernel(%arg0: i32, %arg1: memref<8x32xf32, #tpu.memory_space<vmem>>, %arg2: memref<32x512xf32, #tpu.memory_space<vmem>>, %arg3: memref<8x512xf32, #tpu.memory_space<vmem>>) attributes {dimension_semantics = [#tpu.dimension_semantics<parallel>], iteration_bounds = array<i64: 1>, scalar_prefetch = 0 : i64, scratch_operands = 0 : i64, tpu.core_type = #tpu.core_type<tc>, window_params = [{transform_indices = @transform_0, window_bounds = array<i64: 8, 32>}, {pipeline_mode = #tpu.pipeline_mode<synchronous>, transform_indices = @transform_1, window_bounds = array<i64: 32, 512>}, {transform_indices = @transform_2, window_bounds = array<i64: 8, 512>}]} {
    %c0 = arith.constant 0 : index
    %c0_0 = arith.constant 0 : index
    %0 = vector.load %arg1[%c0, %c0_0] : memref<8x32xf32, #tpu.memory_space<vmem>>, vector<8x32xf32>
    %c0_1 = arith.constant 0 : index
    %c0_2 = arith.constant 0 : index
    %1 = vector.load %arg2[%c0_1, %c0_2] : memref<32x512xf32, #tpu.memory_space<vmem>>, vector<32x512xf32>
    %cst = arith.constant dense<0.000000e+00> : vector<8x512xf32>
    %2 = tpu.matmul %0, %1, %cst {dimension_numbers = #tpu.dot_dimension_numbers<[1], [0], [0], [1], [0, 0, 1, 1], [], []>, precision = #tpu.contract_precision<fp32>} : vector<8x32xf32>, vector<32x512xf32>, vector<8x512xf32> -> vector<8x512xf32>
    %3 = math.sin %2 : vector<8x512xf32>
    %c0_3 = arith.constant 0 : index
    %c0_4 = arith.constant 0 : index
    %4 = vector.load %arg3[%c0_3, %c0_4] : memref<8x512xf32, #tpu.memory_space<vmem>>, vector<8x512xf32>
    tpu.vector_store %arg3[%c0_3, %c0_4], %3 {strides = array<i32>} : memref<8x512xf32, #tpu.memory_space<vmem>>, vector<8x512xf32>,
    return
  }
  func.func @transform_0(%arg0: i32) -> (i32, i32) {
    %c0_i32 = arith.constant 0 : i32
    %c0_i32_0 = arith.constant 0 : i32
    return %arg0, %c0_i32 : i32, i32
  }
  func.func @transform_1(%arg0: i32) -> (i32, i32) {
    %c0_i32 = arith.constant 0 : i32
    %c0_i32_0 = arith.constant 0 : i32
    %c0_i32_1 = arith.constant 0 : i32
    return %c0_i32, %c0_i32_0 : i32, i32
  }
  func.func @transform_2(%arg0: i32) -> (i32, i32) {
    %c0_i32 = arith.constant 0 : i32
    %c0_i32_0 = arith.constant 0 : i32
    return %arg0, %c0_i32 : i32, i32
  }
}

</mosaic_0001>

<llo_original>
// kernel: tpu_custom_call.1
$region0: #{tpu_custom_call.1}
  #allocation0 [shape = 'u32[]', space=smem, size = 0x4, offset = 0x4, fixed_abs, tag = 'smem constant byte address 0x4 - core index']
  #allocation1 [shape = 'u32[72,128]{1,0:T(1,128)}', space=vmem, size = 0x9000, scoped, tag = 'internal scratch']
  %s0 = inlined_call_operand.hbm [shape: f32[8,32], index: 0, kind: input, shape index: {}]
  %s1 = inlined_call_operand.hbm [shape: f32[32,512], index: 1, kind: input, shape index: {}]
  %s2 = inlined_call_operand.hbm [shape: f32[8,512], index: 2, kind: output, shape index: {}]
  %s3 = sld [smem:[#allocation0]]
  $region26: #{tpu_custom_call.1} parent=0
    _
  %s5 = ssub.s32 1, %s3
  %s6 = scalar_select 0, %s5, %s3
  $region1: #{tpu_custom_call.1} parent=0
    #allocation2 [shape = 'u8[4096]{0}', space=vmem, size = 0x1000, scoped, tag = 'input window, operand 0, single buffered']
    #allocation3 [shape = 's32[1]{0}', space=sflag, size = 0x4, scoped, tag = 'scoped memory for tpu_custom_call.1']
    #allocation4 [shape = 's32[1]{0}', space=sflag, size = 0x4, scoped, tag = 'scoped memory for tpu_custom_call.1']
    #allocation5 [shape = 'u8[65536]{0}', space=vmem, size = 0x10000, scoped, tag = 'input window, operand 1, single buffered']
    #allocation6 [shape = 's32[1]{0}', space=sflag, size = 0x4, scoped, tag = 'scoped memory for tpu_custom_call.1']
    #allocation7 [shape = 'u8[16384]{0}', space=vmem, size = 0x4000, scoped, tag = 'output window, operand 0, single buffered']
    %7 = vsyncpa [#allocation3], 0
    %8 = vsyncpa [#allocation6], 0
    %9 = vsyncpa [#allocation4], 0
    // Predicated region
    $region2: #{tpu_custom_call.1} parent=1 // pred_check
      _
    $region3: #{tpu_custom_call.1} parent=1 // pred_check_branch
      %11 = sbr.rel (0) target = $region5
    $region4: #{tpu_custom_call.1} parent=1 // pred_region
      %13 = vsyncadd [#allocation3], 0
      %s15 = sshll.u32 %s0, 4
      %s16 = int_to_ptr.hbm [resolvable:$true] %s15
      %s17 = sshll.u32 [#allocation2], 4
      %s18 = int_to_ptr.vmem [resolvable:$true] %s17
      %20 = dma.hbm_to_vmem [thread:$0]  %s16, 128, %s18, [#allocation3]
    $region5: #{tpu_custom_call.1} parent=1 // pred_fallthru
      _
    // Predicated region
    $region6: #{tpu_custom_call.1} parent=1 // pred_check
      _
    $region7: #{tpu_custom_call.1} parent=1 // pred_check_branch
      %22 = sbr.rel (0) target = $region9
    $region8: #{tpu_custom_call.1} parent=1 // pred_region
      %24 = vsyncadd [#allocation6], 0
      %s25 = sshll.u32 %s1, 4
      %s26 = int_to_ptr.hbm [resolvable:$true] %s25
      %s27 = sshll.u32 [#allocation5], 4
      %s28 = int_to_ptr.vmem [resolvable:$true] %s27
      %33 = dma.hbm_to_vmem [thread:$0]  %s26, 2048, %s28, [#allocation6], 512, 512, 32
    $region9: #{tpu_custom_call.1} parent=1 // pred_fallthru
      _
    // Predicated region
    $region10: #{tpu_custom_call.1} parent=1 // pred_check
      _
    $region11: #{tpu_custom_call.1} parent=1 // pred_check_branch
      %35 = sbr.rel (0) target = $region13
    $region12: #{tpu_custom_call.1} parent=1 // pred_region
      %37 = dma.done [#allocation3], 128
    $region13: #{tpu_custom_call.1} parent=1 // pred_fallthru
      _
    // Predicated region
    $region14: #{tpu_custom_call.1} parent=1 // pred_check
      _
    $region15: #{tpu_custom_call.1} parent=1 // pred_check_branch
      %39 = sbr.rel (0) target = $region17
    $region16: #{tpu_custom_call.1} parent=1 // pred_region
      %41 = dma.done [#allocation6], 2048
    $region17: #{tpu_custom_call.1} parent=1 // pred_fallthru
      _
    %v42 = vld [vmem:[#allocation2] sm:$0xff]
    %v43 = vld [vmem:[#allocation5] sm:$0xff]
    %v44 = vld [vmem:[#allocation5 + $0x8] sm:$0xff]
    %v45 = vld [vmem:[#allocation5 + $0x10] sm:$0xff]
    %v46 = vld [vmem:[#allocation5 + $0x18] sm:$0xff]
    %v47 = vld [vmem:[#allocation5 + $0x20] sm:$0xff]
    %v48 = vld [vmem:[#allocation5 + $0x28] sm:$0xff]
    %v49 = vld [vmem:[#allocation5 + $0x30] sm:$0xff]
    %v50 = vld [vmem:[#allocation5 + $0x38] sm:$0xff]
    %v51 = vld [vmem:[#allocation5 + $0x40] sm:$0xff]
    %v52 = vld [vmem:[#allocation5 + $0x48] sm:$0xff]
    %v53 = vld [vmem:[#allocation5 + $0x50] sm:$0xff]
    %v54 = vld [vmem:[#allocation5 + $0x58] sm:$0xff]
    %v55 = vld [vmem:[#allocation5 + $0x60] sm:$0xff]
    %v56 = vld [vmem:[#allocation5 + $0x68] sm:$0xff]
    %v57 = vld [vmem:[#allocation5 + $0x70] sm:$0xff]
    %v58 = vld [vmem:[#allocation5 + $0x78] sm:$0xff]
    %vm59 = vcmask 261120
    %v61 = vsel %vm59, %v42, 0
    %63 = vmatpush.msra.mxu0 0.0
    %64 = vmatpush.msra.mxu0 0.0
    %65 = vmatpush.msra.mxu0 0.0
    %66 = vmatpush.msra.mxu0 0.0
    %67 = vmatpush.msra.mxu0 0.0
    %68 = vmatpush.msra.mxu0 0.0
    %69 = vmatpush.msra.mxu0 0.0
    %70 = vmatpush.msra.mxu0 0.0
    %71 = vmatpush.msra.mxu0 0.0
    %72 = vmatpush.msra.mxu0 0.0
    %73 = vmatpush.msra.mxu0 0.0
    %74 = vmatpush.msra.mxu0 0.0
    %v75 = vand.u32 %v55, 4294901760
    %76 = vmatpush.msra.mxu0 %v75
    %v77 = vand.u32 %v51, 4294901760
    %78 = vmatpush.msra.mxu0 %v77
    %v79 = vand.u32 %v47, 4294901760
    %80 = vmatpush.msra.mxu0 %v79
    %v81 = vand.u32 %v43, 4294901760
    %82 = vmatpush.msra.mxu0 %v81
    %v83 = vand.u32 %v61, 4294901760
    %v84 = vsub.f32 %v61, %v83
    %v85 = vand.u32 %v84, 4294901760
    %v86 = vsub.f32 %v84, %v85
    %v87 = vand.u32 %v86, 4294901760
    %88 = vmatmul.f32.gmra.mxu0 %v87
    %v89 = vpop.f32.mrf.mxu0
    %v90 = vadd.f32 0.0, %v89
    %91 = vdwg.mxu0
    %92 = vmatpush.msra.mxu0 0.0
    %93 = vmatpush.msra.mxu0 0.0
    %94 = vmatpush.msra.mxu0 0.0
    %95 = vmatpush.msra.mxu0 0.0
    %96 = vmatpush.msra.mxu0 0.0
    %97 = vmatpush.msra.mxu0 0.0
    %98 = vmatpush.msra.mxu0 0.0
    %99 = vmatpush.msra.mxu0 0.0
    %100 = vmatpush.msra.mxu0 0.0
    %101 = vmatpush.msra.mxu0 0.0
    %102 = vmatpush.msra.mxu0 0.0
    %103 = vmatpush.msra.mxu0 0.0
    %v104 = vand.u32 %v55, 4294901760
    %v105 = vsub.f32 %v55, %v104
    %v106 = vand.u32 %v105, 4294901760
    %v107 = vsub.f32 %v105, %v106
    %v108 = vand.u32 %v107, 4294901760
    %109 = vmatpush.msra.mxu0 %v108
    %v110 = vand.u32 %v51, 4294901760
    %v111 = vsub.f32 %v51, %v110
    %v112 = vand.u32 %v111, 4294901760
    %v113 = vsub.f32 %v111, %v112
    %v114 = vand.u32 %v113, 4294901760
    %115 = vmatpush.msra.mxu0 %v114
    %v116 = vand.u32 %v47, 4294901760
    %v117 = vsub.f32 %v47, %v116
    %v118 = vand.u32 %v117, 4294901760
    %v119 = vsub.f32 %v117, %v118
    %v120 = vand.u32 %v119, 4294901760
    %121 = vmatpush.msra.mxu0 %v120
    %v122 = vand.u32 %v43, 4294901760
    %v123 = vsub.f32 %v43, %v122
    %v124 = vand.u32 %v123, 4294901760
    %v125 = vsub.f32 %v123, %v124
    %v126 = vand.u32 %v125, 4294901760
    %127 = vmatpush.msra.mxu0 %v126
    %v128 = vand.u32 %v61, 4294901760
    %129 = vmatmul.f32.gmra.mxu0 %v128
    %v130 = vpop.f32.mrf.mxu0
    %v131 = vadd.f32 %v90, %v130
    %132 = vdwg.mxu0
    %133 = vmatpush.msra.mxu0 0.0
    %134 = vmatpush.msra.mxu0 0.0
    %135 = vmatpush.msra.mxu0 0.0
    %136 = vmatpush.msra.mxu0 0.0
    %137 = vmatpush.msra.mxu0 0.0
    %138 = vmatpush.msra.mxu0 0.0
    %139 = vmatpush.msra.mxu0 0.0
    %140 = vmatpush.msra.mxu0 0.0
    %141 = vmatpush.msra.mxu0 0.0
    %142 = vmatpush.msra.mxu0 0.0
    %143 = vmatpush.msra.mxu0 0.0
    %144 = vmatpush.msra.mxu0 0.0
    %v145 = vand.u32 %v55, 4294901760
    %v146 = vsub.f32 %v55, %v145
    %147 = vmatpush.msra.mxu0 %v146
    %v148 = vand.u32 %v51, 4294901760
    %v149 = vsub.f32 %v51, %v148
    %150 = vmatpush.msra.mxu0 %v149
    %v151 = vand.u32 %v47, 4294901760
    %v152 = vsub.f32 %v47, %v151
    %153 = vmatpush.msra.mxu0 %v152
    %v154 = vand.u32 %v43, 4294901760
    %v155 = vsub.f32 %v43, %v154
    %156 = vmatpush.msra.mxu0 %v155
    %v157 = vand.u32 %v61, 4294901760
    %v158 = vsub.f32 %v61, %v157
    %159 = vmatmul.f32.gmra.mxu0 %v158
    %v160 = vpop.f32.mrf.mxu0
    %v161 = vadd.f32 %v131, %v160
    %162 = vdwg.mxu0
    %163 = vmatpush.msra.mxu0 0.0
    %164 = vmatpush.msra.mxu0 0.0
    %165 = vmatpush.msra.mxu0 0.0
    %166 = vmatpush.msra.mxu0 0.0
    %167 = vmatpush.msra.mxu0 0.0
    %168 = vmatpush.msra.mxu0 0.0
    %169 = vmatpush.msra.mxu0 0.0
    %170 = vmatpush.msra.mxu0 0.0
    %171 = vmatpush.msra.mxu0 0.0
    %172 = vmatpush.msra.mxu0 0.0
    %173 = vmatpush.msra.mxu0 0.0
    %174 = vmatpush.msra.mxu0 0.0
    %v175 = vand.u32 %v55, 4294901760
    %176 = vmatpush.msra.mxu0 %v175
    %v177 = vand.u32 %v51, 4294901760
    %178 = vmatpush.msra.mxu0 %v177
    %v179 = vand.u32 %v47, 4294901760
    %180 = vmatpush.msra.mxu0 %v179
    %v181 = vand.u32 %v43, 4294901760
    %182 = vmatpush.msra.mxu0 %v181
    %v183 = vand.u32 %v61, 4294901760
    %v184 = vsub.f32 %v61, %v183
    %v185 = vand.u32 %v184, 4294901760
    %186 = vmatmul.f32.gmra.mxu0 %v185
    %v187 = vpop.f32.mrf.mxu0
    %v188 = vadd.f32 %v161, %v187
    %189 = vdwg.mxu0
    %190 = vmatpush.msra.mxu0 0.0
    %191 = vmatpush.msra.mxu0 0.0
    %192 = vmatpush.msra.mxu0 0.0
    %193 = vmatpush.msra.mxu0 0.0
    %194 = vmatpush.msra.mxu0 0.0
    %195 = vmatpush.msra.mxu0 0.0
    %196 = vmatpush.msra.mxu0 0.0
    %197 = vmatpush.msra.mxu0 0.0
    %198 = vmatpush.msra.mxu0 0.0
    %199 = vmatpush.msra.mxu0 0.0
    %200 = vmatpush.msra.mxu0 0.0
    %201 = vmatpush.msra.mxu0 0.0
    %v202 = vand.u32 %v55, 4294901760
    %v203 = vsub.f32 %v55, %v202
    %v204 = vand.u32 %v203, 4294901760
    %205 = vmatpush.msra.mxu0 %v204
    %v206 = vand.u32 %v51, 4294901760
    %v207 = vsub.f32 %v51, %v206
    %v208 = vand.u32 %v207, 4294901760
    %209 = vmatpush.msra.mxu0 %v208
    %v210 = vand.u32 %v47, 4294901760
    %v211 = vsub.f32 %v47, %v210
    %v212 = vand.u32 %v211, 4294901760
    %213 = vmatpush.msra.mxu0 %v212
    %v214 = vand.u32 %v43, 4294901760
    %v215 = vsub.f32 %v43, %v214
    %v216 = vand.u32 %v215, 4294901760
    %217 = vmatpush.msra.mxu0 %v216
    %v218 = vand.u32 %v61, 4294901760
    %219 = vmatmul.f32.gmra.mxu0 %v218
    %v220 = vpop.f32.mrf.mxu0
    %v221 = vadd.f32 %v188, %v220
    %222 = vdwg.mxu0
    %223 = vmatpush.msra.mxu0 0.0
    %224 = vmatpush.msra.mxu0 0.0
    %225 = vmatpush.msra.mxu0 0.0
    %226 = vmatpush.msra.mxu0 0.0
    %227 = vmatpush.msra.mxu0 0.0
    %228 = vmatpush.msra.mxu0 0.0
    %229 = vmatpush.msra.mxu0 0.0
    %230 = vmatpush.msra.mxu0 0.0
    %231 = vmatpush.msra.mxu0 0.0
    %232 = vmatpush.msra.mxu0 0.0
    %233 = vmatpush.msra.mxu0 0.0
    %234 = vmatpush.msra.mxu0 0.0
    %v235 = vand.u32 %v55, 4294901760
    %236 = vmatpush.msra.mxu0 %v235
    %v237 = vand.u32 %v51, 4294901760
    %238 = vmatpush.msra.mxu0 %v237
    %v239 = vand.u32 %v47, 4294901760
    %240 = vmatpush.msra.mxu0 %v239
    %v241 = vand.u32 %v43, 4294901760
    %242 = vmatpush.msra.mxu0 %v241
    %v243 = vand.u32 %v61, 4294901760
    %244 = vmatmul.f32.gmra.mxu0 %v243
    %v245 = vpop.f32.mrf.mxu0
    %v246 = vadd.f32 %v221, %v245
    %247 = vdwg.mxu0
    %248 = vmatpush.msra.mxu0 0.0
    %249 = vmatpush.msra.mxu0 0.0
    %250 = vmatpush.msra.mxu0 0.0
    %251 = vmatpush.msra.mxu0 0.0
    %252 = vmatpush.msra.mxu0 0.0
    %253 = vmatpush.msra.mxu0 0.0
    %254 = vmatpush.msra.mxu0 0.0
    %255 = vmatpush.msra.mxu0 0.0
    %256 = vmatpush.msra.mxu0 0.0
    %257 = vmatpush.msra.mxu0 0.0
    %258 = vmatpush.msra.mxu0 0.0
    %259 = vmatpush.msra.mxu0 0.0
    %v260 = vand.u32 %v56, 4294901760
    %261 = vmatpush.msra.mxu0 %v260
    %v262 = vand.u32 %v52, 4294901760
    %263 = vmatpush.msra.mxu0 %v262
    %v264 = vand.u32 %v48, 4294901760
    %265 = vmatpush.msra.mxu0 %v264
    %v266 = vand.u32 %v44, 4294901760
    %267 = vmatpush.msra.mxu0 %v266
    %v268 = vand.u32 %v61, 4294901760
    %v269 = vsub.f32 %v61, %v268
    %v270 = vand.u32 %v269, 4294901760
    %v271 = vsub.f32 %v269, %v270
    %v272 = vand.u32 %v271, 4294901760
    %273 = vmatmul.f32.gmra.mxu0 %v272
    %v274 = vpop.f32.mrf.mxu0
    %v275 = vadd.f32 0.0, %v274
    %276 = vdwg.mxu0
    %277 = vmatpush.msra.mxu0 0.0
    %278 = vmatpush.msra.mxu0 0.0
    %279 = vmatpush.msra.mxu0 0.0
    %280 = vmatpush.msra.mxu0 0.0
    %281 = vmatpush.msra.mxu0 0.0
    %282 = vmatpush.msra.mxu0 0.0
    %283 = vmatpush.msra.mxu0 0.0
    %284 = vmatpush.msra.mxu0 0.0
    %285 = vmatpush.msra.mxu0 0.0
    %286 = vmatpush.msra.mxu0 0.0
    %287 = vmatpush.msra.mxu0 0.0
    %288 = vmatpush.msra.mxu0 0.0
    %v289 = vand.u32 %v56, 4294901760
    %v290 = vsub.f32 %v56, %v289
    %v291 = vand.u32 %v290, 4294901760
    %v292 = vsub.f32 %v290, %v291
    %v293 = vand.u32 %v292, 4294901760
    %294 = vmatpush.msra.mxu0 %v293
    %v295 = vand.u32 %v52, 4294901760
    %v296 = vsub.f32 %v52, %v295
    %v297 = vand.u32 %v296, 4294901760
    %v298 = vsub.f32 %v296, %v297
    %v299 = vand.u32 %v298, 4294901760
    %300 = vmatpush.msra.mxu0 %v299
    %v301 = vand.u32 %v48, 4294901760
    %v302 = vsub.f32 %v48, %v301
    %v303 = vand.u32 %v302, 4294901760
    %v304 = vsub.f32 %v302, %v303
    %v305 = vand.u32 %v304, 4294901760
    %306 = vmatpush.msra.mxu0 %v305
    %v307 = vand.u32 %v44, 4294901760
    %v308 = vsub.f32 %v44, %v307
    %v309 = vand.u32 %v308, 4294901760
    %v310 = vsub.f32 %v308, %v309
    %v311 = vand.u32 %v310, 4294901760
    %312 = vmatpush.msra.mxu0 %v311
    %v313 = vand.u32 %v61, 4294901760
    %314 = vmatmul.f32.gmra.mxu0 %v313
    %v315 = vpop.f32.mrf.mxu0
    %v316 = vadd.f32 %v275, %v315
    %317 = vdwg.mxu0
    %318 = vmatpush.msra.mxu0 0.0
    %319 = vmatpush.msra.mxu0 0.0
    %320 = vmatpush.msra.mxu0 0.0
    %321 = vmatpush.msra.mxu0 0.0
    %322 = vmatpush.msra.mxu0 0.0
    %323 = vmatpush.msra.mxu0 0.0
    %324 = vmatpush.msra.mxu0 0.0
    %325 = vmatpush.msra.mxu0 0.0
    %326 = vmatpush.msra.mxu0 0.0
    %327 = vmatpush.msra.mxu0 0.0
    %328 = vmatpush.msra.mxu0 0.0
    %329 = vmatpush.msra.mxu0 0.0
    %v330 = vand.u32 %v56, 4294901760
    %v331 = vsub.f32 %v56, %v330
    %332 = vmatpush.msra.mxu0 %v331
    %v333 = vand.u32 %v52, 4294901760
    %v334 = vsub.f32 %v52, %v333
    %335 = vmatpush.msra.mxu0 %v334
    %v336 = vand.u32 %v48, 4294901760
    %v337 = vsub.f32 %v48, %v336
    %338 = vmatpush.msra.mxu0 %v337
    %v339 = vand.u32 %v44, 4294901760
    %v340 = vsub.f32 %v44, %v339
    %341 = vmatpush.msra.mxu0 %v340
    %v342 = vand.u32 %v61, 4294901760
    %v343 = vsub.f32 %v61, %v342
    %344 = vmatmul.f32.gmra.mxu0 %v343
    %v345 = vpop.f32.mrf.mxu0
    %v346 = vadd.f32 %v316, %v345
    %347 = vdwg.mxu0
    %348 = vmatpush.msra.mxu0 0.0
    %349 = vmatpush.msra.mxu0 0.0
    %350 = vmatpush.msra.mxu0 0.0
    %351 = vmatpush.msra.mxu0 0.0
    %352 = vmatpush.msra.mxu0 0.0
    %353 = vmatpush.msra.mxu0 0.0
    %354 = vmatpush.msra.mxu0 0.0
    %355 = vmatpush.msra.mxu0 0.0
    %356 = vmatpush.msra.mxu0 0.0
    %357 = vmatpush.msra.mxu0 0.0
    %358 = vmatpush.msra.mxu0 0.0
    %359 = vmatpush.msra.mxu0 0.0
    %v360 = vand.u32 %v56, 4294901760
    %361 = vmatpush.msra.mxu0 %v360
    %v362 = vand.u32 %v52, 4294901760
    %363 = vmatpush.msra.mxu0 %v362
    %v364 = vand.u32 %v48, 4294901760
    %365 = vmatpush.msra.mxu0 %v364
    %v366 = vand.u32 %v44, 4294901760
    %367 = vmatpush.msra.mxu0 %v366
    %v368 = vand.u32 %v61, 4294901760
    %v369 = vsub.f32 %v61, %v368
    %v370 = vand.u32 %v369, 4294901760
    %371 = vmatmul.f32.gmra.mxu0 %v370
    %v372 = vpop.f32.mrf.mxu0
    %v373 = vadd.f32 %v346, %v372
    %374 = vdwg.mxu0
    %375 = vmatpush.msra.mxu0 0.0
    %376 = vmatpush.msra.mxu0 0.0
    %377 = vmatpush.msra.mxu0 0.0
    %378 = vmatpush.msra.mxu0 0.0
    %379 = vmatpush.msra.mxu0 0.0
    %380 = vmatpush.msra.mxu0 0.0
    %381 = vmatpush.msra.mxu0 0.0
    %382 = vmatpush.msra.mxu0 0.0
    %383 = vmatpush.msra.mxu0 0.0
    %384 = vmatpush.msra.mxu0 0.0
    %385 = vmatpush.msra.mxu0 0.0
    %386 = vmatpush.msra.mxu0 0.0
    %v387 = vand.u32 %v56, 4294901760
    %v388 = vsub.f32 %v56, %v387
    %v389 = vand.u32 %v388, 4294901760
    %390 = vmatpush.msra.mxu0 %v389
    %v391 = vand.u32 %v52, 4294901760
    %v392 = vsub.f32 %v52, %v391
    %v393 = vand.u32 %v392, 4294901760
    %394 = vmatpush.msra.mxu0 %v393
    %v395 = vand.u32 %v48, 4294901760
    %v396 = vsub.f32 %v48, %v395
    %v397 = vand.u32 %v396, 4294901760
    %398 = vmatpush.msra.mxu0 %v397
    %v399 = vand.u32 %v44, 4294901760
    %v400 = vsub.f32 %v44, %v399
    %v401 = vand.u32 %v400, 4294901760
    %402 = vmatpush.msra.mxu0 %v401
    %v403 = vand.u32 %v61, 4294901760
    %404 = vmatmul.f32.gmra.mxu0 %v403
    %v405 = vpop.f32.mrf.mxu0
    %v406 = vadd.f32 %v373, %v405
    %407 = vdwg.mxu0
    %408 = vmatpush.msra.mxu0 0.0
    %409 = vmatpush.msra.mxu0 0.0
    %410 = vmatpush.msra.mxu0 0.0
    %411 = vmatpush.msra.mxu0 0.0
    %412 = vmatpush.msra.mxu0 0.0
    %413 = vmatpush.msra.mxu0 0.0
    %414 = vmatpush.msra.mxu0 0.0
    %415 = vmatpush.msra.mxu0 0.0
    %416 = vmatpush.msra.mxu0 0.0
    %417 = vmatpush.msra.mxu0 0.0
    %418 = vmatpush.msra.mxu0 0.0
    %419 = vmatpush.msra.mxu0 0.0
    %v420 = vand.u32 %v56, 4294901760
    %421 = vmatpush.msra.mxu0 %v420
    %v422 = vand.u32 %v52, 4294901760
    %423 = vmatpush.msra.mxu0 %v422
    %v424 = vand.u32 %v48, 4294901760
    %425 = vmatpush.msra.mxu0 %v424
    %v426 = vand.u32 %v44, 4294901760
    %427 = vmatpush.msra.mxu0 %v426
    %v428 = vand.u32 %v61, 4294901760
    %429 = vmatmul.f32.gmra.mxu0 %v428
    %v430 = vpop.f32.mrf.mxu0
    %v431 = vadd.f32 %v406, %v430
    %432 = vdwg.mxu0
    %433 = vmatpush.msra.mxu0 0.0
    %434 = vmatpush.msra.mxu0 0.0
    %435 = vmatpush.msra.mxu0 0.0
    %436 = vmatpush.msra.mxu0 0.0
    %437 = vmatpush.msra.mxu0 0.0
    %438 = vmatpush.msra.mxu0 0.0
    %439 = vmatpush.msra.mxu0 0.0
    %440 = vmatpush.msra.mxu0 0.0
    %441 = vmatpush.msra.mxu0 0.0
    %442 = vmatpush.msra.mxu0 0.0
    %443 = vmatpush.msra.mxu0 0.0
    %444 = vmatpush.msra.mxu0 0.0
    %v445 = vand.u32 %v57, 4294901760
    %446 = vmatpush.msra.mxu0 %v445
    %v447 = vand.u32 %v53, 4294901760
    %448 = vmatpush.msra.mxu0 %v447
    %v449 = vand.u32 %v49, 4294901760
    %450 = vmatpush.msra.mxu0 %v449
    %v451 = vand.u32 %v45, 4294901760
    %452 = vmatpush.msra.mxu0 %v451
    %v453 = vand.u32 %v61, 4294901760
    %v454 = vsub.f32 %v61, %v453
    %v455 = vand.u32 %v454, 4294901760
    %v456 = vsub.f32 %v454, %v455
    %v457 = vand.u32 %v456, 4294901760
    %458 = vmatmul.f32.gmra.mxu0 %v457
    %v459 = vpop.f32.mrf.mxu0
    %v460 = vadd.f32 0.0, %v459
    %461 = vdwg.mxu0
    %462 = vmatpush.msra.mxu0 0.0
    %463 = vmatpush.msra.mxu0 0.0
    %464 = vmatpush.msra.mxu0 0.0
    %465 = vmatpush.msra.mxu0 0.0
    %466 = vmatpush.msra.mxu0 0.0
    %467 = vmatpush.msra.mxu0 0.0
    %468 = vmatpush.msra.mxu0 0.0
    %469 = vmatpush.msra.mxu0 0.0
    %470 = vmatpush.msra.mxu0 0.0
    %471 = vmatpush.msra.mxu0 0.0
    %472 = vmatpush.msra.mxu0 0.0
    %473 = vmatpush.msra.mxu0 0.0
    %v474 = vand.u32 %v57, 4294901760
    %v475 = vsub.f32 %v57, %v474
    %v476 = vand.u32 %v475, 4294901760
    %v477 = vsub.f32 %v475, %v476
    %v478 = vand.u32 %v477, 4294901760
    %479 = vmatpush.msra.mxu0 %v478
    %v480 = vand.u32 %v53, 4294901760
    %v481 = vsub.f32 %v53, %v480
    %v482 = vand.u32 %v481, 4294901760
    %v483 = vsub.f32 %v481, %v482
    %v484 = vand.u32 %v483, 4294901760
    %485 = vmatpush.msra.mxu0 %v484
    %v486 = vand.u32 %v49, 4294901760
    %v487 = vsub.f32 %v49, %v486
    %v488 = vand.u32 %v487, 4294901760
    %v489 = vsub.f32 %v487, %v488
    %v490 = vand.u32 %v489, 4294901760
    %491 = vmatpush.msra.mxu0 %v490
    %v492 = vand.u32 %v45, 4294901760
    %v493 = vsub.f32 %v45, %v492
    %v494 = vand.u32 %v493, 4294901760
    %v495 = vsub.f32 %v493, %v494
    %v496 = vand.u32 %v495, 4294901760
    %497 = vmatpush.msra.mxu0 %v496
    %v498 = vand.u32 %v61, 4294901760
    %499 = vmatmul.f32.gmra.mxu0 %v498
    %v500 = vpop.f32.mrf.mxu0
    %v501 = vadd.f32 %v460, %v500
    %502 = vdwg.mxu0
    %503 = vmatpush.msra.mxu0 0.0
    %504 = vmatpush.msra.mxu0 0.0
    %505 = vmatpush.msra.mxu0 0.0
    %506 = vmatpush.msra.mxu0 0.0
    %507 = vmatpush.msra.mxu0 0.0
    %508 = vmatpush.msra.mxu0 0.0
    %509 = vmatpush.msra.mxu0 0.0
    %510 = vmatpush.msra.mxu0 0.0
    %511 = vmatpush.msra.mxu0 0.0
    %512 = vmatpush.msra.mxu0 0.0
    %513 = vmatpush.msra.mxu0 0.0
    %514 = vmatpush.msra.mxu0 0.0
    %v515 = vand.u32 %v57, 4294901760
    %v516 = vsub.f32 %v57, %v515
    %517 = vmatpush.msra.mxu0 %v516
    %v518 = vand.u32 %v53, 4294901760
    %v519 = vsub.f32 %v53, %v518
    %520 = vmatpush.msra.mxu0 %v519
    %v521 = vand.u32 %v49, 4294901760
    %v522 = vsub.f32 %v49, %v521
    %523 = vmatpush.msra.mxu0 %v522
    %v524 = vand.u32 %v45, 4294901760
    %v525 = vsub.f32 %v45, %v524
    %526 = vmatpush.msra.mxu0 %v525
    %v527 = vand.u32 %v61, 4294901760
    %v528 = vsub.f32 %v61, %v527
    %529 = vmatmul.f32.gmra.mxu0 %v528
    %v530 = vpop.f32.mrf.mxu0
    %v531 = vadd.f32 %v501, %v530
    %532 = vdwg.mxu0
    %533 = vmatpush.msra.mxu0 0.0
    %534 = vmatpush.msra.mxu0 0.0
    %535 = vmatpush.msra.mxu0 0.0
    %536 = vmatpush.msra.mxu0 0.0
    %537 = vmatpush.msra.mxu0 0.0
    %538 = vmatpush.msra.mxu0 0.0
    %539 = vmatpush.msra.mxu0 0.0
    %540 = vmatpush.msra.mxu0 0.0
    %541 = vmatpush.msra.mxu0 0.0
    %542 = vmatpush.msra.mxu0 0.0
    %543 = vmatpush.msra.mxu0 0.0
    %544 = vmatpush.msra.mxu0 0.0
    %v545 = vand.u32 %v57, 4294901760
    %546 = vmatpush.msra.mxu0 %v545
    %v547 = vand.u32 %v53, 4294901760
    %548 = vmatpush.msra.mxu0 %v547
    %v549 = vand.u32 %v49, 4294901760
    %550 = vmatpush.msra.mxu0 %v549
    %v551 = vand.u32 %v45, 4294901760
    %552 = vmatpush.msra.mxu0 %v551
    %v553 = vand.u32 %v61, 4294901760
    %v554 = vsub.f32 %v61, %v553
    %v555 = vand.u32 %v554, 4294901760
    %556 = vmatmul.f32.gmra.mxu0 %v555
    %v557 = vpop.f32.mrf.mxu0
    %v558 = vadd.f32 %v531, %v557
    %559 = vdwg.mxu0
    %560 = vmatpush.msra.mxu0 0.0
    %561 = vmatpush.msra.mxu0 0.0
    %562 = vmatpush.msra.mxu0 0.0
    %563 = vmatpush.msra.mxu0 0.0
    %564 = vmatpush.msra.mxu0 0.0
    %565 = vmatpush.msra.mxu0 0.0
    %566 = vmatpush.msra.mxu0 0.0
    %567 = vmatpush.msra.mxu0 0.0
    %568 = vmatpush.msra.mxu0 0.0
    %569 = vmatpush.msra.mxu0 0.0
    %570 = vmatpush.msra.mxu0 0.0
    %571 = vmatpush.msra.mxu0 0.0
    %v572 = vand.u32 %v57, 4294901760
    %v573 = vsub.f32 %v57, %v572
    %v574 = vand.u32 %v573, 4294901760
    %575 = vmatpush.msra.mxu0 %v574
    %v576 = vand.u32 %v53, 4294901760
    %v577 = vsub.f32 %v53, %v576
    %v578 = vand.u32 %v577, 4294901760
    %579 = vmatpush.msra.mxu0 %v578
    %v580 = vand.u32 %v49, 4294901760
    %v581 = vsub.f32 %v49, %v580
    %v582 = vand.u32 %v581, 4294901760
    %583 = vmatpush.msra.mxu0 %v582
    %v584 = vand.u32 %v45, 4294901760
    %v585 = vsub.f32 %v45, %v584
    %v586 = vand.u32 %v585, 4294901760
    %587 = vmatpush.msra.mxu0 %v586
    %v588 = vand.u32 %v61, 4294901760
    %589 = vmatmul.f32.gmra.mxu0 %v588
    %v590 = vpop.f32.mrf.mxu0
    %v591 = vadd.f32 %v558, %v590
    %592 = vdwg.mxu0
    %593 = vmatpush.msra.mxu0 0.0
    %594 = vmatpush.msra.mxu0 0.0
    %595 = vmatpush.msra.mxu0 0.0
    %596 = vmatpush.msra.mxu0 0.0
    %597 = vmatpush.msra.mxu0 0.0
    %598 = vmatpush.msra.mxu0 0.0
    %599 = vmatpush.msra.mxu0 0.0
    %600 = vmatpush.msra.mxu0 0.0
    %601 = vmatpush.msra.mxu0 0.0
    %602 = vmatpush.msra.mxu0 0.0
    %603 = vmatpush.msra.mxu0 0.0
    %604 = vmatpush.msra.mxu0 0.0
    %v605 = vand.u32 %v57, 4294901760
    %606 = vmatpush.msra.mxu0 %v605
    %v607 = vand.u32 %v53, 4294901760
    %608 = vmatpush.msra.mxu0 %v607
    %v609 = vand.u32 %v49, 4294901760
    %610 = vmatpush.msra.mxu0 %v609
    %v611 = vand.u32 %v45, 4294901760
    %612 = vmatpush.msra.mxu0 %v611
    %v613 = vand.u32 %v61, 4294901760
    %614 = vmatmul.f32.gmra.mxu0 %v613
    %v615 = vpop.f32.mrf.mxu0
    %v616 = vadd.f32 %v591, %v615
    %617 = vdwg.mxu0
    %618 = vmatpush.msra.mxu0 0.0
    %619 = vmatpush.msra.mxu0 0.0
    %620 = vmatpush.msra.mxu0 0.0
    %621 = vmatpush.msra.mxu0 0.0
    %622 = vmatpush.msra.mxu0 0.0
    %623 = vmatpush.msra.mxu0 0.0
    %624 = vmatpush.msra.mxu0 0.0
    %625 = vmatpush.msra.mxu0 0.0
    %626 = vmatpush.msra.mxu0 0.0
    %627 = vmatpush.msra.mxu0 0.0
    %628 = vmatpush.msra.mxu0 0.0
    %629 = vmatpush.msra.mxu0 0.0
    %v630 = vand.u32 %v58, 4294901760
    %631 = vmatpush.msra.mxu0 %v630
    %v632 = vand.u32 %v54, 4294901760
    %633 = vmatpush.msra.mxu0 %v632
    %v634 = vand.u32 %v50, 4294901760
    %635 = vmatpush.msra.mxu0 %v634
    %v636 = vand.u32 %v46, 4294901760
    %637 = vmatpush.msra.mxu0 %v636
    %v638 = vand.u32 %v61, 4294901760
    %v639 = vsub.f32 %v61, %v638
    %v640 = vand.u32 %v639, 4294901760
    %v641 = vsub.f32 %v639, %v640
    %v642 = vand.u32 %v641, 4294901760
    %643 = vmatmul.f32.gmra.mxu0 %v642
    %v644 = vpop.f32.mrf.mxu0
    %v645 = vadd.f32 0.0, %v644
    %646 = vdwg.mxu0
    %647 = vmatpush.msra.mxu0 0.0
    %648 = vmatpush.msra.mxu0 0.0
    %649 = vmatpush.msra.mxu0 0.0
    %650 = vmatpush.msra.mxu0 0.0
    %651 = vmatpush.msra.mxu0 0.0
    %652 = vmatpush.msra.mxu0 0.0
    %653 = vmatpush.msra.mxu0 0.0
    %654 = vmatpush.msra.mxu0 0.0
    %655 = vmatpush.msra.mxu0 0.0
    %656 = vmatpush.msra.mxu0 0.0
    %657 = vmatpush.msra.mxu0 0.0
    %658 = vmatpush.msra.mxu0 0.0
    %v659 = vand.u32 %v58, 4294901760
    %v660 = vsub.f32 %v58, %v659
    %v661 = vand.u32 %v660, 4294901760
    %v662 = vsub.f32 %v660, %v661
    %v663 = vand.u32 %v662, 4294901760
    %664 = vmatpush.msra.mxu0 %v663
    %v665 = vand.u32 %v54, 4294901760
    %v666 = vsub.f32 %v54, %v665
    %v667 = vand.u32 %v666, 4294901760
    %v668 = vsub.f32 %v666, %v667
    %v669 = vand.u32 %v668, 4294901760
    %670 = vmatpush.msra.mxu0 %v669
    %v671 = vand.u32 %v50, 4294901760
    %v672 = vsub.f32 %v50, %v671
    %v673 = vand.u32 %v672, 4294901760
    %v674 = vsub.f32 %v672, %v673
    %v675 = vand.u32 %v674, 4294901760
    %676 = vmatpush.msra.mxu0 %v675
    %v677 = vand.u32 %v46, 4294901760
    %v678 = vsub.f32 %v46, %v677
    %v679 = vand.u32 %v678, 4294901760
    %v680 = vsub.f32 %v678, %v679
    %v681 = vand.u32 %v680, 4294901760
    %682 = vmatpush.msra.mxu0 %v681
    %v683 = vand.u32 %v61, 4294901760
    %684 = vmatmul.f32.gmra.mxu0 %v683
    %v685 = vpop.f32.mrf.mxu0
    %v686 = vadd.f32 %v645, %v685
    %687 = vdwg.mxu0
    %688 = vmatpush.msra.mxu0 0.0
    %689 = vmatpush.msra.mxu0 0.0
    %690 = vmatpush.msra.mxu0 0.0
    %691 = vmatpush.msra.mxu0 0.0
    %692 = vmatpush.msra.mxu0 0.0
    %693 = vmatpush.msra.mxu0 0.0
    %694 = vmatpush.msra.mxu0 0.0
    %695 = vmatpush.msra.mxu0 0.0
    %696 = vmatpush.msra.mxu0 0.0
    %697 = vmatpush.msra.mxu0 0.0
    %698 = vmatpush.msra.mxu0 0.0
    %699 = vmatpush.msra.mxu0 0.0
    %v700 = vand.u32 %v58, 4294901760
    %v701 = vsub.f32 %v58, %v700
    %702 = vmatpush.msra.mxu0 %v701
    %v703 = vand.u32 %v54, 4294901760
    %v704 = vsub.f32 %v54, %v703
    %705 = vmatpush.msra.mxu0 %v704
    %v706 = vand.u32 %v50, 4294901760
    %v707 = vsub.f32 %v50, %v706
    %708 = vmatpush.msra.mxu0 %v707
    %v709 = vand.u32 %v46, 4294901760
    %v710 = vsub.f32 %v46, %v709
    %711 = vmatpush.msra.mxu0 %v710
    %v712 = vand.u32 %v61, 4294901760
    %v713 = vsub.f32 %v61, %v712
    %714 = vmatmul.f32.gmra.mxu0 %v713
    %v715 = vpop.f32.mrf.mxu0
    %v716 = vadd.f32 %v686, %v715
    %717 = vdwg.mxu0
    %718 = vmatpush.msra.mxu0 0.0
    %719 = vmatpush.msra.mxu0 0.0
    %720 = vmatpush.msra.mxu0 0.0
    %721 = vmatpush.msra.mxu0 0.0
    %722 = vmatpush.msra.mxu0 0.0
    %723 = vmatpush.msra.mxu0 0.0
    %724 = vmatpush.msra.mxu0 0.0
    %725 = vmatpush.msra.mxu0 0.0
    %726 = vmatpush.msra.mxu0 0.0
    %727 = vmatpush.msra.mxu0 0.0
    %728 = vmatpush.msra.mxu0 0.0
    %729 = vmatpush.msra.mxu0 0.0
    %v730 = vand.u32 %v58, 4294901760
    %731 = vmatpush.msra.mxu0 %v730
    %v732 = vand.u32 %v54, 4294901760
    %733 = vmatpush.msra.mxu0 %v732
    %v734 = vand.u32 %v50, 4294901760
    %735 = vmatpush.msra.mxu0 %v734
    %v736 = vand.u32 %v46, 4294901760
    %737 = vmatpush.msra.mxu0 %v736
    %v738 = vand.u32 %v61, 4294901760
    %v739 = vsub.f32 %v61, %v738
    %v740 = vand.u32 %v739, 4294901760
    %741 = vmatmul.f32.gmra.mxu0 %v740
    %v742 = vpop.f32.mrf.mxu0
    %v743 = vadd.f32 %v716, %v742
    %744 = vdwg.mxu0
    %745 = vmatpush.msra.mxu0 0.0
    %746 = vmatpush.msra.mxu0 0.0
    %747 = vmatpush.msra.mxu0 0.0
    %748 = vmatpush.msra.mxu0 0.0
    %749 = vmatpush.msra.mxu0 0.0
    %750 = vmatpush.msra.mxu0 0.0
    %751 = vmatpush.msra.mxu0 0.0
    %752 = vmatpush.msra.mxu0 0.0
    %753 = vmatpush.msra.mxu0 0.0
    %754 = vmatpush.msra.mxu0 0.0
    %755 = vmatpush.msra.mxu0 0.0
    %756 = vmatpush.msra.mxu0 0.0
    %v757 = vand.u32 %v58, 4294901760
    %v758 = vsub.f32 %v58, %v757
    %v759 = vand.u32 %v758, 4294901760
    %760 = vmatpush.msra.mxu0 %v759
    %v761 = vand.u32 %v54, 4294901760
    %v762 = vsub.f32 %v54, %v761
    %v763 = vand.u32 %v762, 4294901760
    %764 = vmatpush.msra.mxu0 %v763
    %v765 = vand.u32 %v50, 4294901760
    %v766 = vsub.f32 %v50, %v765
    %v767 = vand.u32 %v766, 4294901760
    %768 = vmatpush.msra.mxu0 %v767
    %v769 = vand.u32 %v46, 4294901760
    %v770 = vsub.f32 %v46, %v769
    %v771 = vand.u32 %v770, 4294901760
    %772 = vmatpush.msra.mxu0 %v771
    %v773 = vand.u32 %v61, 4294901760
    %774 = vmatmul.f32.gmra.mxu0 %v773
    %v775 = vpop.f32.mrf.mxu0
    %v776 = vadd.f32 %v743, %v775
    %777 = vdwg.mxu0
    %778 = vmatpush.msra.mxu0 0.0
    %779 = vmatpush.msra.mxu0 0.0
    %780 = vmatpush.msra.mxu0 0.0
    %781 = vmatpush.msra.mxu0 0.0
    %782 = vmatpush.msra.mxu0 0.0
    %783 = vmatpush.msra.mxu0 0.0
    %784 = vmatpush.msra.mxu0 0.0
    %785 = vmatpush.msra.mxu0 0.0
    %786 = vmatpush.msra.mxu0 0.0
    %787 = vmatpush.msra.mxu0 0.0
    %788 = vmatpush.msra.mxu0 0.0
    %789 = vmatpush.msra.mxu0 0.0
    %v790 = vand.u32 %v58, 4294901760
    %791 = vmatpush.msra.mxu0 %v790
    %v792 = vand.u32 %v54, 4294901760
    %793 = vmatpush.msra.mxu0 %v792
    %v794 = vand.u32 %v50, 4294901760
    %795 = vmatpush.msra.mxu0 %v794
    %v796 = vand.u32 %v46, 4294901760
    %797 = vmatpush.msra.mxu0 %v796
    %v798 = vand.u32 %v61, 4294901760
    %799 = vmatmul.f32.gmra.mxu0 %v798
    %v800 = vpop.f32.mrf.mxu0
    %v801 = vadd.f32 %v776, %v800
    %802 = vdwg.mxu0
    %v803 = vand.u32 2147483647, %v246
    %vm804 = vcmp.le.f32.partialorder %v803, 0.7853982
    %vm805 = vcmp.lt.s32.totalorder %v246, 0
    %v806 = vand.u32 %v246, 2139095040
    %v807 = vshrl.u32 %v806, 23
    %v808 = vsub.s32 %v807, 127
    %v809 = vand.u32 2147483647, %v246
    %v810 = vand.u32 %v809, 8388607
    %v811 = vor.u32 %v810, 8388608
    %v812 = vsub.s32 0, %v811
    %v813 = vadd.s32 %v808, 1
    %vm814 = vcmp.gt.s32.totalorder %v813, 0
    %v815 = vsel %vm814, %v813, 0
    %v816 = vshrl.u32 %v815, 5
    %v817 = vand.u32 %v815, 31
    %v818 = vsub.s32 32, %v817
    %v819 = vshrl.u32 683565275, %v818
    %v820 = vshll.u32 683565275, %v817
    %v821 = vshrl.u32 2475754826, %v818
    %v822 = vor.u32 %v820, %v821
    %v823 = vshll.u32 2475754826, %v817
    %v824 = vshrl.u32 2131351028, %v818
    %v825 = vor.u32 %v823, %v824
    %v826 = vshll.u32 2131351028, %v817
    %v827 = vshrl.u32 2102212464, %v818
    %v828 = vor.u32 %v826, %v827
    %v829 = vshll.u32 2102212464, %v817
    %v830 = vshrl.u32 920167782, %v818
    %v831 = vor.u32 %v829, %v830
    %v832 = vshll.u32 920167782, %v817
    %v833 = vshrl.u32 1326507024, %v818
    %v834 = vor.u32 %v832, %v833
    %vm835 = vcmp.lt.s32.totalorder %v816, 1
    %vm836 = vcmp.lt.s32.totalorder %v816, 2
    %vm837 = vcmp.lt.s32.totalorder %v816, 3
    %vm838 = vcmp.lt.s32.totalorder %v816, 4
    %v839 = vsel %vm835, %v819, %v822
    %v840 = vsel %vm838, %v828, 2102212464
    %v841 = vsel %vm837, %v825, %v840
    %v842 = vsel %vm836, %v839, %v841
    %v843 = vsel %vm835, %v822, %v825
    %v844 = vsel %vm838, %v831, 920167782
    %v845 = vsel %vm837, %v828, %v844
    %v846 = vsel %vm836, %v843, %v845
    %v847 = vsel %vm835, %v825, %v828
    %v848 = vsel %vm838, %v834, 1326507024
    %v849 = vsel %vm837, %v831, %v848
    %v850 = vsel %vm836, %v847, %v849
    %v851 = vshll.u32 %v811, 8
    %v852 = vand.u32 %v851, 65535
    %v853 = vshrl.u32 %v851, 16
    %v854 = vand.u32 %v850, 65535
    %v855 = vshrl.u32 %v850, 16
    %v856 = vmul.u32 %v852, %v854
    %v857 = vmul.u32 %v852, %v855
    %v858 = vmul.u32 %v853, %v854
    %v859 = vmul.u32 %v853, %v855
    %v860 = vshll.u32 %v857, 16
    %v861 = vshrl.u32 %v857, 16
    %v862 = vshll.u32 %v858, 16
    %v863 = vshrl.u32 %v858, 16
    %vm864 = vc.u32 %v856, %v860
    %v865 = vsel %vm864, 1, 0
    %v866 = vadd.s32 %v856, %v860
    %v867 = vadd.s32 %v859, %v865
    %vm868 = vc.u32 %v866, %v862
    %v869 = vsel %vm868, 1, 0
    %v870 = vadd.s32 %v866, %v862
    %v871 = vadd.s32 %v867, %v869
    %v872 = vadd.s32 %v871, %v861
    %v873 = vadd.s32 %v872, %v863
    %v874 = vand.u32 %v851, 65535
    %v875 = vshrl.u32 %v851, 16
    %v876 = vand.u32 %v846, 65535
    %v877 = vshrl.u32 %v846, 16
    %v878 = vmul.u32 %v874, %v876
    %v879 = vmul.u32 %v874, %v877
    %v880 = vmul.u32 %v875, %v876
    %v881 = vmul.u32 %v875, %v877
    %v882 = vshll.u32 %v879, 16
    %v883 = vshrl.u32 %v879, 16
    %v884 = vshll.u32 %v880, 16
    %v885 = vshrl.u32 %v880, 16
    %vm886 = vc.u32 %v878, %v882
    %v887 = vsel %vm886, 1, 0
    %v888 = vadd.s32 %v878, %v882
    %v889 = vadd.s32 %v881, %v887
    %vm890 = vc.u32 %v888, %v884
    %v891 = vsel %vm890, 1, 0
    %v892 = vadd.s32 %v888, %v884
    %v893 = vadd.s32 %v889, %v891
    %v894 = vadd.s32 %v893, %v883
    %v895 = vadd.s32 %v894, %v885
    %v896 = vmul.u32 %v851, %v842
    %v897 = vadd.s32 %v873, %v892
    %vm898 = vc.u32 %v873, %v892
    %v899 = vadd.s32 %v895, 1
    %v900 = vsel %vm898, %v899, %v895
    %v901 = vadd.s32 %v896, %v900
    %v902 = vadd.s32 %v901, 536870912
    %v903 = vshrl.u32 %v902, 30
    %v904 = vshll.u32 %v903, 30
    %v905 = vsub.s32 %v901, %v904
    %vm906 = vcmp.lt.s32.totalorder %v905, 0
    %v907 = vsub.s32 0, %v905
    %v908 = vsel %vm906, %v907, %v905
    %v909 = vclz %v908
    %v910 = vsub.s32 %v909, 2
    %vm911 = vcmp.gt.s32.totalorder 0, %v910
    %v912 = vsel %vm911, 0, %v910
    %v913 = vsub.s32 32, %v912
    %v914 = vshll.u32 %v905, %v912
    %v915 = vshrl.u32 %v897, %v913
    %v916 = vor.u32 %v914, %v915
    %v917 = vsub.s32 4294967266, %v912
    %v918 = vadd.s32 %v917, 127
    %v919 = vshll.u32 %v918, 23
    %v920 = vor.u32 4788187, %v919
    %v921 = vand.u32 2147483647, %v920
    %v923 = vcvt.s32.f32 %v916
    %v924 = vmul.f32 %v923, %v921
    %v925 = vxor.u32 %v924, 2147483648
    %v926 = vsel %vm805, %v925, %v924
    %v927 = vsub.s32 4, %v903
    %v928 = vsel %vm805, %v927, %v903
    %v929 = vsel %vm804, %v246, %v926
    %v930 = vsel %vm804, 0, %v928
    %v931 = vmul.f32 %v929, %v929
    %v932 = vmul.f32 %v931, -0.001358992
    %v933 = vadd.f32 %v932, 0.041655596
    %v934 = vmul.f32 %v931, %v933
    %v935 = vadd.f32 %v934, -0.4999988
    %v936 = vmul.f32 %v931, %v935
    %v937 = vadd.f32 1.0, %v936
    %v938 = vmul.f32 %v929, %v929
    %v939 = vmul.f32 %v938, -0.00019511016
    %v940 = vadd.f32 %v939, 0.008332121
    %v941 = vmul.f32 %v938, %v940
    %v942 = vadd.f32 %v941, -0.16666654
    %v943 = vmul.f32 %v938, %v942
    %v944 = vadd.f32 %v943, 1.0
    %v945 = vmul.f32 %v944, %v929
    %vm946 = vweird.f32 %v246
    %v947 = vadd.s32 %v930, 3
    %v948 = vand.u32 %v947, 3
    %vm949 = vcmp.lt.s32.totalorder %v948, 2
    %vm950 = vcmp.eq.s32.totalorder %v948, 0
    %v951 = vxor.u32 %v945, 2147483648
    %v952 = vsel %vm950, %v937, %v951
    %vm953 = vcmp.eq.s32.totalorder %v948, 2
    %v954 = vxor.u32 %v937, 2147483648
    %v955 = vsel %vm953, %v954, %v945
    %v956 = vsel %vm949, %v952, %v955
    %v957 = vsel %vm946, nan, %v956
    %v958 = vand.u32 2147483647, %v431
    %vm959 = vcmp.le.f32.partialorder %v958, 0.7853982
    %vm960 = vcmp.lt.s32.totalorder %v431, 0
    %v961 = vand.u32 %v431, 2139095040
    %v962 = vshrl.u32 %v961, 23
    %v963 = vsub.s32 %v962, 127
    %v964 = vand.u32 2147483647, %v431
    %v965 = vand.u32 %v964, 8388607
    %v966 = vor.u32 %v965, 8388608
    %v967 = vsub.s32 0, %v966
    %v968 = vadd.s32 %v963, 1
    %vm969 = vcmp.gt.s32.totalorder %v968, 0
    %v970 = vsel %vm969, %v968, 0
    %v971 = vshrl.u32 %v970, 5
    %v972 = vand.u32 %v970, 31
    %v973 = vsub.s32 32, %v972
    %v974 = vshrl.u32 683565275, %v973
    %v975 = vshll.u32 683565275, %v972
    %v976 = vshrl.u32 2475754826, %v973
    %v977 = vor.u32 %v975, %v976
    %v978 = vshll.u32 2475754826, %v972
    %v979 = vshrl.u32 2131351028, %v973
    %v980 = vor.u32 %v978, %v979
    %v981 = vshll.u32 2131351028, %v972
    %v982 = vshrl.u32 2102212464, %v973
    %v983 = vor.u32 %v981, %v982
    %v984 = vshll.u32 2102212464, %v972
    %v985 = vshrl.u32 920167782, %v973
    %v986 = vor.u32 %v984, %v985
    %v987 = vshll.u32 920167782, %v972
    %v988 = vshrl.u32 1326507024, %v973
    %v989 = vor.u32 %v987, %v988
    %vm990 = vcmp.lt.s32.totalorder %v971, 1
    %vm991 = vcmp.lt.s32.totalorder %v971, 2
    %vm992 = vcmp.lt.s32.totalorder %v971, 3
    %vm993 = vcmp.lt.s32.totalorder %v971, 4
    %v994 = vsel %vm990, %v974, %v977
    %v995 = vsel %vm993, %v983, 2102212464
    %v996 = vsel %vm992, %v980, %v995
    %v997 = vsel %vm991, %v994, %v996
    %v998 = vsel %vm990, %v977, %v980
    %v999 = vsel %vm993, %v986, 920167782
    %v1000 = vsel %vm992, %v983, %v999
    %v1001 = vsel %vm991, %v998, %v1000
    %v1002 = vsel %vm990, %v980, %v983
    %v1003 = vsel %vm993, %v989, 1326507024
    %v1004 = vsel %vm992, %v986, %v1003
    %v1005 = vsel %vm991, %v1002, %v1004
    %v1006 = vshll.u32 %v966, 8
    %v1007 = vand.u32 %v1006, 65535
    %v1008 = vshrl.u32 %v1006, 16
    %v1009 = vand.u32 %v1005, 65535
    %v1010 = vshrl.u32 %v1005, 16
    %v1011 = vmul.u32 %v1007, %v1009
    %v1012 = vmul.u32 %v1007, %v1010
    %v1013 = vmul.u32 %v1008, %v1009
    %v1014 = vmul.u32 %v1008, %v1010
    %v1015 = vshll.u32 %v1012, 16
    %v1016 = vshrl.u32 %v1012, 16
    %v1017 = vshll.u32 %v1013, 16
    %v1018 = vshrl.u32 %v1013, 16
    %vm1019 = vc.u32 %v1011, %v1015
    %v1020 = vsel %vm1019, 1, 0
    %v1021 = vadd.s32 %v1011, %v1015
    %v1022 = vadd.s32 %v1014, %v1020
    %vm1023 = vc.u32 %v1021, %v1017
    %v1024 = vsel %vm1023, 1, 0
    %v1025 = vadd.s32 %v1021, %v1017
    %v1026 = vadd.s32 %v1022, %v1024
    %v1027 = vadd.s32 %v1026, %v1016
    %v1028 = vadd.s32 %v1027, %v1018
    %v1029 = vand.u32 %v1006, 65535
    %v1030 = vshrl.u32 %v1006, 16
    %v1031 = vand.u32 %v1001, 65535
    %v1032 = vshrl.u32 %v1001, 16
    %v1033 = vmul.u32 %v1029, %v1031
    %v1034 = vmul.u32 %v1029, %v1032
    %v1035 = vmul.u32 %v1030, %v1031
    %v1036 = vmul.u32 %v1030, %v1032
    %v1037 = vshll.u32 %v1034, 16
    %v1038 = vshrl.u32 %v1034, 16
    %v1039 = vshll.u32 %v1035, 16
    %v1040 = vshrl.u32 %v1035, 16
    %vm1041 = vc.u32 %v1033, %v1037
    %v1042 = vsel %vm1041, 1, 0
    %v1043 = vadd.s32 %v1033, %v1037
    %v1044 = vadd.s32 %v1036, %v1042
    %vm1045 = vc.u32 %v1043, %v1039
    %v1046 = vsel %vm1045, 1, 0
    %v1047 = vadd.s32 %v1043, %v1039
    %v1048 = vadd.s32 %v1044, %v1046
    %v1049 = vadd.s32 %v1048, %v1038
    %v1050 = vadd.s32 %v1049, %v1040
    %v1051 = vmul.u32 %v1006, %v997
    %v1052 = vadd.s32 %v1028, %v1047
    %vm1053 = vc.u32 %v1028, %v1047
    %v1054 = vadd.s32 %v1050, 1
    %v1055 = vsel %vm1053, %v1054, %v1050
    %v1056 = vadd.s32 %v1051, %v1055
    %v1057 = vadd.s32 %v1056, 536870912
    %v1058 = vshrl.u32 %v1057, 30
    %v1059 = vshll.u32 %v1058, 30
    %v1060 = vsub.s32 %v1056, %v1059
    %vm1061 = vcmp.lt.s32.totalorder %v1060, 0
    %v1062 = vsub.s32 0, %v1060
    %v1063 = vsel %vm1061, %v1062, %v1060
    %v1064 = vclz %v1063
    %v1065 = vsub.s32 %v1064, 2
    %vm1066 = vcmp.gt.s32.totalorder 0, %v1065
    %v1067 = vsel %vm1066, 0, %v1065
    %v1068 = vsub.s32 32, %v1067
    %v1069 = vshll.u32 %v1060, %v1067
    %v1070 = vshrl.u32 %v1052, %v1068
    %v1071 = vor.u32 %v1069, %v1070
    %v1072 = vsub.s32 4294967266, %v1067
    %v1073 = vadd.s32 %v1072, 127
    %v1074 = vshll.u32 %v1073, 23
    %v1075 = vor.u32 4788187, %v1074
    %v1076 = vand.u32 2147483647, %v1075
    %v1078 = vcvt.s32.f32 %v1071
    %v1079 = vmul.f32 %v1078, %v1076
    %v1080 = vxor.u32 %v1079, 2147483648
    %v1081 = vsel %vm960, %v1080, %v1079
    %v1082 = vsub.s32 4, %v1058
    %v1083 = vsel %vm960, %v1082, %v1058
    %v1084 = vsel %vm959, %v431, %v1081
    %v1085 = vsel %vm959, 0, %v1083
    %v1086 = vmul.f32 %v1084, %v1084
    %v1087 = vmul.f32 %v1086, -0.001358992
    %v1088 = vadd.f32 %v1087, 0.041655596
    %v1089 = vmul.f32 %v1086, %v1088
    %v1090 = vadd.f32 %v1089, -0.4999988
    %v1091 = vmul.f32 %v1086, %v1090
    %v1092 = vadd.f32 1.0, %v1091
    %v1093 = vmul.f32 %v1084, %v1084
    %v1094 = vmul.f32 %v1093, -0.00019511016
    %v1095 = vadd.f32 %v1094, 0.008332121
    %v1096 = vmul.f32 %v1093, %v1095
    %v1097 = vadd.f32 %v1096, -0.16666654
    %v1098 = vmul.f32 %v1093, %v1097
    %v1099 = vadd.f32 %v1098, 1.0
    %v1100 = vmul.f32 %v1099, %v1084
    %vm1101 = vweird.f32 %v431
    %v1102 = vadd.s32 %v1085, 3
    %v1103 = vand.u32 %v1102, 3
    %vm1104 = vcmp.lt.s32.totalorder %v1103, 2
    %vm1105 = vcmp.eq.s32.totalorder %v1103, 0
    %v1106 = vxor.u32 %v1100, 2147483648
    %v1107 = vsel %vm1105, %v1092, %v1106
    %vm1108 = vcmp.eq.s32.totalorder %v1103, 2
    %v1109 = vxor.u32 %v1092, 2147483648
    %v1110 = vsel %vm1108, %v1109, %v1100
    %v1111 = vsel %vm1104, %v1107, %v1110
    %v1112 = vsel %vm1101, nan, %v1111
    %v1113 = vand.u32 2147483647, %v616
    %vm1114 = vcmp.le.f32.partialorder %v1113, 0.7853982
    %vm1115 = vcmp.lt.s32.totalorder %v616, 0
    %v1116 = vand.u32 %v616, 2139095040
    %v1117 = vshrl.u32 %v1116, 23
    %v1118 = vsub.s32 %v1117, 127
    %v1119 = vand.u32 2147483647, %v616
    %v1120 = vand.u32 %v1119, 8388607
    %v1121 = vor.u32 %v1120, 8388608
    %v1122 = vsub.s32 0, %v1121
    %v1123 = vadd.s32 %v1118, 1
    %vm1124 = vcmp.gt.s32.totalorder %v1123, 0
    %v1125 = vsel %vm1124, %v1123, 0
    %v1126 = vshrl.u32 %v1125, 5
    %v1127 = vand.u32 %v1125, 31
    %v1128 = vsub.s32 32, %v1127
    %v1129 = vshrl.u32 683565275, %v1128
    %v1130 = vshll.u32 683565275, %v1127
    %v1131 = vshrl.u32 2475754826, %v1128
    %v1132 = vor.u32 %v1130, %v1131
    %v1133 = vshll.u32 2475754826, %v1127
    %v1134 = vshrl.u32 2131351028, %v1128
    %v1135 = vor.u32 %v1133, %v1134
    %v1136 = vshll.u32 2131351028, %v1127
    %v1137 = vshrl.u32 2102212464, %v1128
    %v1138 = vor.u32 %v1136, %v1137
    %v1139 = vshll.u32 2102212464, %v1127
    %v1140 = vshrl.u32 920167782, %v1128
    %v1141 = vor.u32 %v1139, %v1140
    %v1142 = vshll.u32 920167782, %v1127
    %v1143 = vshrl.u32 1326507024, %v1128
    %v1144 = vor.u32 %v1142, %v1143
    %vm1145 = vcmp.lt.s32.totalorder %v1126, 1
    %vm1146 = vcmp.lt.s32.totalorder %v1126, 2
    %vm1147 = vcmp.lt.s32.totalorder %v1126, 3
    %vm1148 = vcmp.lt.s32.totalorder %v1126, 4
    %v1149 = vsel %vm1145, %v1129, %v1132
    %v1150 = vsel %vm1148, %v1138, 2102212464
    %v1151 = vsel %vm1147, %v1135, %v1150
    %v1152 = vsel %vm1146, %v1149, %v1151
    %v1153 = vsel %vm1145, %v1132, %v1135
    %v1154 = vsel %vm1148, %v1141, 920167782
    %v1155 = vsel %vm1147, %v1138, %v1154
    %v1156 = vsel %vm1146, %v1153, %v1155
    %v1157 = vsel %vm1145, %v1135, %v1138
    %v1158 = vsel %vm1148, %v1144, 1326507024
    %v1159 = vsel %vm1147, %v1141, %v1158
    %v1160 = vsel %vm1146, %v1157, %v1159
    %v1161 = vshll.u32 %v1121, 8
    %v1162 = vand.u32 %v1161, 65535
    %v1163 = vshrl.u32 %v1161, 16
    %v1164 = vand.u32 %v1160, 65535
    %v1165 = vshrl.u32 %v1160, 16
    %v1166 = vmul.u32 %v1162, %v1164
    %v1167 = vmul.u32 %v1162, %v1165
    %v1168 = vmul.u32 %v1163, %v1164
    %v1169 = vmul.u32 %v1163, %v1165
    %v1170 = vshll.u32 %v1167, 16
    %v1171 = vshrl.u32 %v1167, 16
    %v1172 = vshll.u32 %v1168, 16
    %v1173 = vshrl.u32 %v1168, 16
    %vm1174 = vc.u32 %v1166, %v1170
    %v1175 = vsel %vm1174, 1, 0
    %v1176 = vadd.s32 %v1166, %v1170
    %v1177 = vadd.s32 %v1169, %v1175
    %vm1178 = vc.u32 %v1176, %v1172
    %v1179 = vsel %vm1178, 1, 0
    %v1180 = vadd.s32 %v1176, %v1172
    %v1181 = vadd.s32 %v1177, %v1179
    %v1182 = vadd.s32 %v1181, %v1171
    %v1183 = vadd.s32 %v1182, %v1173
    %v1184 = vand.u32 %v1161, 65535
    %v1185 = vshrl.u32 %v1161, 16
    %v1186 = vand.u32 %v1156, 65535
    %v1187 = vshrl.u32 %v1156, 16
    %v1188 = vmul.u32 %v1184, %v1186
    %v1189 = vmul.u32 %v1184, %v1187
    %v1190 = vmul.u32 %v1185, %v1186
    %v1191 = vmul.u32 %v1185, %v1187
    %v1192 = vshll.u32 %v1189, 16
    %v1193 = vshrl.u32 %v1189, 16
    %v1194 = vshll.u32 %v1190, 16
    %v1195 = vshrl.u32 %v1190, 16
    %vm1196 = vc.u32 %v1188, %v1192
    %v1197 = vsel %vm1196, 1, 0
    %v1198 = vadd.s32 %v1188, %v1192
    %v1199 = vadd.s32 %v1191, %v1197
    %vm1200 = vc.u32 %v1198, %v1194
    %v1201 = vsel %vm1200, 1, 0
    %v1202 = vadd.s32 %v1198, %v1194
    %v1203 = vadd.s32 %v1199, %v1201
    %v1204 = vadd.s32 %v1203, %v1193
    %v1205 = vadd.s32 %v1204, %v1195
    %v1206 = vmul.u32 %v1161, %v1152
    %v1207 = vadd.s32 %v1183, %v1202
    %vm1208 = vc.u32 %v1183, %v1202
    %v1209 = vadd.s32 %v1205, 1
    %v1210 = vsel %vm1208, %v1209, %v1205
    %v1211 = vadd.s32 %v1206, %v1210
    %v1212 = vadd.s32 %v1211, 536870912
    %v1213 = vshrl.u32 %v1212, 30
    %v1214 = vshll.u32 %v1213, 30
    %v1215 = vsub.s32 %v1211, %v1214
    %vm1216 = vcmp.lt.s32.totalorder %v1215, 0
    %v1217 = vsub.s32 0, %v1215
    %v1218 = vsel %vm1216, %v1217, %v1215
    %v1219 = vclz %v1218
    %v1220 = vsub.s32 %v1219, 2
    %vm1221 = vcmp.gt.s32.totalorder 0, %v1220
    %v1222 = vsel %vm1221, 0, %v1220
    %v1223 = vsub.s32 32, %v1222
    %v1224 = vshll.u32 %v1215, %v1222
    %v1225 = vshrl.u32 %v1207, %v1223
    %v1226 = vor.u32 %v1224, %v1225
    %v1227 = vsub.s32 4294967266, %v1222
    %v1228 = vadd.s32 %v1227, 127
    %v1229 = vshll.u32 %v1228, 23
    %v1230 = vor.u32 4788187, %v1229
    %v1231 = vand.u32 2147483647, %v1230
    %v1233 = vcvt.s32.f32 %v1226
    %v1234 = vmul.f32 %v1233, %v1231
    %v1235 = vxor.u32 %v1234, 2147483648
    %v1236 = vsel %vm1115, %v1235, %v1234
    %v1237 = vsub.s32 4, %v1213
    %v1238 = vsel %vm1115, %v1237, %v1213
    %v1239 = vsel %vm1114, %v616, %v1236
    %v1240 = vsel %vm1114, 0, %v1238
    %v1241 = vmul.f32 %v1239, %v1239
    %v1242 = vmul.f32 %v1241, -0.001358992
    %v1243 = vadd.f32 %v1242, 0.041655596
    %v1244 = vmul.f32 %v1241, %v1243
    %v1245 = vadd.f32 %v1244, -0.4999988
    %v1246 = vmul.f32 %v1241, %v1245
    %v1247 = vadd.f32 1.0, %v1246
    %v1248 = vmul.f32 %v1239, %v1239
    %v1249 = vmul.f32 %v1248, -0.00019511016
    %v1250 = vadd.f32 %v1249, 0.008332121
    %v1251 = vmul.f32 %v1248, %v1250
    %v1252 = vadd.f32 %v1251, -0.16666654
    %v1253 = vmul.f32 %v1248, %v1252
    %v1254 = vadd.f32 %v1253, 1.0
    %v1255 = vmul.f32 %v1254, %v1239
    %vm1256 = vweird.f32 %v616
    %v1257 = vadd.s32 %v1240, 3
    %v1258 = vand.u32 %v1257, 3
    %vm1259 = vcmp.lt.s32.totalorder %v1258, 2
    %vm1260 = vcmp.eq.s32.totalorder %v1258, 0
    %v1261 = vxor.u32 %v1255, 2147483648
    %v1262 = vsel %vm1260, %v1247, %v1261
    %vm1263 = vcmp.eq.s32.totalorder %v1258, 2
    %v1264 = vxor.u32 %v1247, 2147483648
    %v1265 = vsel %vm1263, %v1264, %v1255
    %v1266 = vsel %vm1259, %v1262, %v1265
    %v1267 = vsel %vm1256, nan, %v1266
    %v1268 = vand.u32 2147483647, %v801
    %vm1269 = vcmp.le.f32.partialorder %v1268, 0.7853982
    %vm1270 = vcmp.lt.s32.totalorder %v801, 0
    %v1271 = vand.u32 %v801, 2139095040
    %v1272 = vshrl.u32 %v1271, 23
    %v1273 = vsub.s32 %v1272, 127
    %v1274 = vand.u32 2147483647, %v801
    %v1275 = vand.u32 %v1274, 8388607
    %v1276 = vor.u32 %v1275, 8388608
    %v1277 = vsub.s32 0, %v1276
    %v1278 = vadd.s32 %v1273, 1
    %vm1279 = vcmp.gt.s32.totalorder %v1278, 0
    %v1280 = vsel %vm1279, %v1278, 0
    %v1281 = vshrl.u32 %v1280, 5
    %v1282 = vand.u32 %v1280, 31
    %v1283 = vsub.s32 32, %v1282
    %v1284 = vshrl.u32 683565275, %v1283
    %v1285 = vshll.u32 683565275, %v1282
    %v1286 = vshrl.u32 2475754826, %v1283
    %v1287 = vor.u32 %v1285, %v1286
    %v1288 = vshll.u32 2475754826, %v1282
    %v1289 = vshrl.u32 2131351028, %v1283
    %v1290 = vor.u32 %v1288, %v1289
    %v1291 = vshll.u32 2131351028, %v1282
    %v1292 = vshrl.u32 2102212464, %v1283
    %v1293 = vor.u32 %v1291, %v1292
    %v1294 = vshll.u32 2102212464, %v1282
    %v1295 = vshrl.u32 920167782, %v1283
    %v1296 = vor.u32 %v1294, %v1295
    %v1297 = vshll.u32 920167782, %v1282
    %v1298 = vshrl.u32 1326507024, %v1283
    %v1299 = vor.u32 %v1297, %v1298
    %vm1300 = vcmp.lt.s32.totalorder %v1281, 1
    %vm1301 = vcmp.lt.s32.totalorder %v1281, 2
    %vm1302 = vcmp.lt.s32.totalorder %v1281, 3
    %vm1303 = vcmp.lt.s32.totalorder %v1281, 4
    %v1304 = vsel %vm1300, %v1284, %v1287
    %v1305 = vsel %vm1303, %v1293, 2102212464
    %v1306 = vsel %vm1302, %v1290, %v1305
    %v1307 = vsel %vm1301, %v1304, %v1306
    %v1308 = vsel %vm1300, %v1287, %v1290
    %v1309 = vsel %vm1303, %v1296, 920167782
    %v1310 = vsel %vm1302, %v1293, %v1309
    %v1311 = vsel %vm1301, %v1308, %v1310
    %v1312 = vsel %vm1300, %v1290, %v1293
    %v1313 = vsel %vm1303, %v1299, 1326507024
    %v1314 = vsel %vm1302, %v1296, %v1313
    %v1315 = vsel %vm1301, %v1312, %v1314
    %v1316 = vshll.u32 %v1276, 8
    %v1317 = vand.u32 %v1316, 65535
    %v1318 = vshrl.u32 %v1316, 16
    %v1319 = vand.u32 %v1315, 65535
    %v1320 = vshrl.u32 %v1315, 16
    %v1321 = vmul.u32 %v1317, %v1319
    %v1322 = vmul.u32 %v1317, %v1320
    %v1323 = vmul.u32 %v1318, %v1319
    %v1324 = vmul.u32 %v1318, %v1320
    %v1325 = vshll.u32 %v1322, 16
    %v1326 = vshrl.u32 %v1322, 16
    %v1327 = vshll.u32 %v1323, 16
    %v1328 = vshrl.u32 %v1323, 16
    %vm1329 = vc.u32 %v1321, %v1325
    %v1330 = vsel %vm1329, 1, 0
    %v1331 = vadd.s32 %v1321, %v1325
    %v1332 = vadd.s32 %v1324, %v1330
    %vm1333 = vc.u32 %v1331, %v1327
    %v1334 = vsel %vm1333, 1, 0
    %v1335 = vadd.s32 %v1331, %v1327
    %v1336 = vadd.s32 %v1332, %v1334
    %v1337 = vadd.s32 %v1336, %v1326
    %v1338 = vadd.s32 %v1337, %v1328
    %v1339 = vand.u32 %v1316, 65535
    %v1340 = vshrl.u32 %v1316, 16
    %v1341 = vand.u32 %v1311, 65535
    %v1342 = vshrl.u32 %v1311, 16
    %v1343 = vmul.u32 %v1339, %v1341
    %v1344 = vmul.u32 %v1339, %v1342
    %v1345 = vmul.u32 %v1340, %v1341
    %v1346 = vmul.u32 %v1340, %v1342
    %v1347 = vshll.u32 %v1344, 16
    %v1348 = vshrl.u32 %v1344, 16
    %v1349 = vshll.u32 %v1345, 16
    %v1350 = vshrl.u32 %v1345, 16
    %vm1351 = vc.u32 %v1343, %v1347
    %v1352 = vsel %vm1351, 1, 0
    %v1353 = vadd.s32 %v1343, %v1347
    %v1354 = vadd.s32 %v1346, %v1352
    %vm1355 = vc.u32 %v1353, %v1349
    %v1356 = vsel %vm1355, 1, 0
    %v1357 = vadd.s32 %v1353, %v1349
    %v1358 = vadd.s32 %v1354, %v1356
    %v1359 = vadd.s32 %v1358, %v1348
    %v1360 = vadd.s32 %v1359, %v1350
    %v1361 = vmul.u32 %v1316, %v1307
    %v1362 = vadd.s32 %v1338, %v1357
    %vm1363 = vc.u32 %v1338, %v1357
    %v1364 = vadd.s32 %v1360, 1
    %v1365 = vsel %vm1363, %v1364, %v1360
    %v1366 = vadd.s32 %v1361, %v1365
    %v1367 = vadd.s32 %v1366, 536870912
    %v1368 = vshrl.u32 %v1367, 30
    %v1369 = vshll.u32 %v1368, 30
    %v1370 = vsub.s32 %v1366, %v1369
    %vm1371 = vcmp.lt.s32.totalorder %v1370, 0
    %v1372 = vsub.s32 0, %v1370
    %v1373 = vsel %vm1371, %v1372, %v1370
    %v1374 = vclz %v1373
    %v1375 = vsub.s32 %v1374, 2
    %vm1376 = vcmp.gt.s32.totalorder 0, %v1375
    %v1377 = vsel %vm1376, 0, %v1375
    %v1378 = vsub.s32 32, %v1377
    %v1379 = vshll.u32 %v1370, %v1377
    %v1380 = vshrl.u32 %v1362, %v1378
    %v1381 = vor.u32 %v1379, %v1380
    %v1382 = vsub.s32 4294967266, %v1377
    %v1383 = vadd.s32 %v1382, 127
    %v1384 = vshll.u32 %v1383, 23
    %v1385 = vor.u32 4788187, %v1384
    %v1386 = vand.u32 2147483647, %v1385
    %v1388 = vcvt.s32.f32 %v1381
    %v1389 = vmul.f32 %v1388, %v1386
    %v1390 = vxor.u32 %v1389, 2147483648
    %v1391 = vsel %vm1270, %v1390, %v1389
    %v1392 = vsub.s32 4, %v1368
    %v1393 = vsel %vm1270, %v1392, %v1368
    %v1394 = vsel %vm1269, %v801, %v1391
    %v1395 = vsel %vm1269, 0, %v1393
    %v1396 = vmul.f32 %v1394, %v1394
    %v1397 = vmul.f32 %v1396, -0.001358992
    %v1398 = vadd.f32 %v1397, 0.041655596
    %v1399 = vmul.f32 %v1396, %v1398
    %v1400 = vadd.f32 %v1399, -0.4999988
    %v1401 = vmul.f32 %v1396, %v1400
    %v1402 = vadd.f32 1.0, %v1401
    %v1403 = vmul.f32 %v1394, %v1394
    %v1404 = vmul.f32 %v1403, -0.00019511016
    %v1405 = vadd.f32 %v1404, 0.008332121
    %v1406 = vmul.f32 %v1403, %v1405
    %v1407 = vadd.f32 %v1406, -0.16666654
    %v1408 = vmul.f32 %v1403, %v1407
    %v1409 = vadd.f32 %v1408, 1.0
    %v1410 = vmul.f32 %v1409, %v1394
    %vm1411 = vweird.f32 %v801
    %v1412 = vadd.s32 %v1395, 3
    %v1413 = vand.u32 %v1412, 3
    %vm1414 = vcmp.lt.s32.totalorder %v1413, 2
    %vm1415 = vcmp.eq.s32.totalorder %v1413, 0
    %v1416 = vxor.u32 %v1410, 2147483648
    %v1417 = vsel %vm1415, %v1402, %v1416
    %vm1418 = vcmp.eq.s32.totalorder %v1413, 2
    %v1419 = vxor.u32 %v1402, 2147483648
    %v1420 = vsel %vm1418, %v1419, %v1410
    %v1421 = vsel %vm1414, %v1417, %v1420
    %v1422 = vsel %vm1411, nan, %v1421
    %1423 = vst [vmem:[#allocation7] sm:$0xff] %v957
    %1424 = vst [vmem:[#allocation7 + $0x8] sm:$0xff] %v1112
    %1425 = vst [vmem:[#allocation7 + $0x10] sm:$0xff] %v1267
    %1426 = vst [vmem:[#allocation7 + $0x18] sm:$0xff] %v1422
    // Predicated region
    $region18: #{tpu_custom_call.1} parent=1 // pred_check
      _
    $region19: #{tpu_custom_call.1} parent=1 // pred_check_branch
      %1428 = sbr.rel (0) target = $region21
    $region20: #{tpu_custom_call.1} parent=1 // pred_region
      %1430 = vsyncadd [#allocation4], 0
      %s1432 = sshll.u32 [#allocation7], 4
      %s1433 = int_to_ptr.vmem [resolvable:$true] %s1432
      %s1434 = sshll.u32 %s2, 4
      %s1435 = int_to_ptr.hbm [resolvable:$true] %s1434
      %1437 = dma.vmem_to_hbm [thread:$0]  %s1433, 512, %s1435, [#allocation4]
    $region21: #{tpu_custom_call.1} parent=1 // pred_fallthru
      _
    // Predicated region
    $region22: #{tpu_custom_call.1} parent=1 // pred_check
      _
    $region23: #{tpu_custom_call.1} parent=1 // pred_check_branch
      %1439 = sbr.rel (0) target = $region25
    $region24: #{tpu_custom_call.1} parent=1 // pred_region
      %1441 = dma.done [#allocation4], 512
    $region25: #{tpu_custom_call.1} parent=1 // pred_fallthru
      _
    %1442 = vsyncpa [#allocation3], 1
    %1443 = vsyncpa [#allocation6], 1
    %1444 = vsyncpa [#allocation4], 1

</llo_original>
